<compile_context>
chip_gen: v5e
topology: v5e:2x2
jax: 0.10.0
libtpu: 0.0.40
codegen_flags: <defaults>
</compile_context>

<pallas_src>
import functools
import numpy as np
import jax
import jax.numpy as jnp
from jax.experimental import pallas as pl
from jax.experimental.pallas import tpu as pltpu


# ----------------------------- in-kernel helpers ----------------------------

def _predictions(pose, w_r, sd):
    """u_a[b, n, d*M + m] = sum_x pose[b, n, a*sd + x] * w_r[x, n, d*M + m].

    pose: (B, N, sd*sd)   w_r: (sd, N, sd*M)   returns list over a of (B, N, sd*M).
    Pure VPU: sd broadcast-multiply-adds per a (MXU with K=4 would be wasted).
    """
    u_list = []
    for a in range(sd):
        acc = pose[:, :, a * sd:a * sd + 1] * w_r[0:1]
        for x in range(1, sd):
            acc = acc + pose[:, :, a * sd + x:a * sd + x + 1] * w_r[x:x + 1]
        u_list.append(acc)
    return u_list


def _permute_and_layernorm(nv_list, P, S, St, gamma_t, beta_t, inv_group, eps):
    """Concat per-a results (a,d,m order), permute lanes to (m,a,d), LayerNorm
    over each out_d-sized lane group. Everything stays lane-dense (last dim =
    out_n*out_d = 128)."""
    out_pre = jnp.concatenate(nv_list, axis=-1)                        # (B, DM)
    out = jnp.dot(out_pre, P, preferred_element_type=jnp.float32)      # (m,a,d)
    mean = jnp.dot(out, S, preferred_element_type=jnp.float32) * inv_group
    cent = out - jnp.dot(mean, St, preferred_element_type=jnp.float32)
    var = jnp.dot(cent * cent, S, preferred_element_type=jnp.float32) * inv_group
    inv_std = jax.lax.rsqrt(jnp.dot(var, St, preferred_element_type=jnp.float32) + eps)
    return cent * inv_std * gamma_t + beta_t


# -------------------------------- kernels -----------------------------------

def _uniform_kernel(pose_ref, w_r_ref, P_ref, S_ref, St_ref, g_ref, b_ref, out_ref,
                    *, sd, M, inv_m, inv_group, eps):
    # First routing pass: query_key == 1/M uniformly.
    pose = pose_ref[...]
    w_r = w_r_ref[...]
    u_list = _predictions(pose, w_r, sd)
    nv_list = [jnp.sum(u, axis=1) * inv_m for u in u_list]             # (B, sd*M)
    out_ref[...] = _permute_and_layernorm(
        nv_list, P_ref[...], S_ref[...], St_ref[...], g_ref[...], b_ref[...],
        inv_group, eps)


def _refine_kernel(pose_ref, w_r_ref, nvp_t_ref, P_ref, S_ref, St_ref, g_ref, b_ref,
                   out_ref, *, sd, M, scale, inv_group, eps):
    # Refinement pass: agreement logits -> softmax over m -> weighted predictions.
    pose = pose_ref[...]
    w_r = w_r_ref[...]
    nvp_t = nvp_t_ref[...]                                             # (B, sd*sd, M)
    u_list = _predictions(pose, w_r, sd)                               # a -> (B, N, sd*M)

    B, N, _ = pose.shape
    logits = jnp.zeros((B, N, M), jnp.float32)
    for a in range(sd):
        u_a = u_list[a]
        for d in range(sd):
            logits = logits + (u_a[:, :, d * M:(d + 1) * M] *
                               nvp_t[:, a * sd + d:a * sd + d + 1, :])
    logits = logits * scale

    lmax = jnp.max(logits, axis=-1, keepdims=True)
    e = jnp.exp(logits - lmax)
    qk = e * pl.reciprocal(jnp.sum(e, axis=-1, keepdims=True), approx=True)
    # reference does an extra renormalization with +1e-10
    qk = qk * pl.reciprocal(jnp.sum(qk, axis=-1, keepdims=True) + 1e-10, approx=True)

    qk_rep = jnp.concatenate([qk] * sd, axis=-1)                       # matches (d, m) cols
    nv_list = [jnp.sum(qk_rep * u, axis=1) for u in u_list]            # (B, sd*M)
    out_ref[...] = _permute_and_layernorm(
        nv_list, P_ref[...], S_ref[...], St_ref[...], g_ref[...], b_ref[...],
        inv_group, eps)


# ------------------------------ jitted wrappers ------------------------------

def _prep_pose(x, use_gap):
    if use_gap and x.ndim == 4:
        x = jnp.mean(x, axis=2)
    if x.ndim == 4:
        b, d1, d2, d3 = x.shape
        # maybe_permute_input's permute/view/permute chain is exactly this reshape.
        x = x.reshape(b, d1 * d2, d3)
    return x.astype(jnp.float32)


@functools.partial(jax.jit, static_argnames=("out_n", "sd", "use_gap"))
def _forward_uniform(x, w_r, P, S, St, gamma_t, beta_t, *, out_n, sd, use_gap):
    pose = _prep_pose(x, use_gap)
    B = pose.shape[0]
    DM = out_n * sd * sd
    kernel = functools.partial(_uniform_kernel, sd=sd, M=out_n,
                               inv_m=1.0 / out_n, inv_group=1.0 / (sd * sd), eps=1e-5)
    out_flat = pl.pallas_call(
        kernel,
        out_shape=jax.ShapeDtypeStruct((B, DM), jnp.float32),
        grid=(1,),
        in_specs=[pl.BlockSpec(pose.shape, lambda i: (0, 0, 0)),
                  pl.BlockSpec(w_r.shape, lambda i: (0, 0, 0)),
                  pl.BlockSpec(P.shape, lambda i: (0, 0)),
                  pl.BlockSpec(S.shape, lambda i: (0, 0)),
                  pl.BlockSpec(St.shape, lambda i: (0, 0)),
                  pl.BlockSpec(gamma_t.shape, lambda i: (0, 0)),
                  pl.BlockSpec(beta_t.shape, lambda i: (0, 0))],
        out_specs=pl.BlockSpec((B, DM), lambda i: (0, 0)),
        compiler_params=pltpu.CompilerParams(dimension_semantics=("arbitrary",)),
    )(pose, w_r, P, S, St, gamma_t, beta_t)
    return out_flat.reshape(B, out_n, sd * sd)


@functools.partial(jax.jit, static_argnames=("out_n", "sd", "use_gap"))
def _forward_refine(x, next_capsule_value, w_r, P, S, St, gamma_t, beta_t,
                    *, out_n, sd, use_gap):
    pose = _prep_pose(x, use_gap)
    B = pose.shape[0]
    DM = out_n * sd * sd
    nvp = next_capsule_value.reshape(B, out_n, sd * sd).astype(jnp.float32)
    nvp_t = jnp.swapaxes(nvp, 1, 2)                                    # (B, sd*sd, out_n)
    scale = 1.0 / float(sd * sd) ** 0.5
    kernel = functools.partial(_refine_kernel, sd=sd, M=out_n, scale=scale,
                               inv_group=1.0 / (sd * sd), eps=1e-5)
    out_flat = pl.pallas_call(
        kernel,
        out_shape=jax.ShapeDtypeStruct((B, DM), jnp.float32),
        grid=(1,),
        in_specs=[pl.BlockSpec(pose.shape, lambda i: (0, 0, 0)),
                  pl.BlockSpec(w_r.shape, lambda i: (0, 0, 0)),
                  pl.BlockSpec(nvp_t.shape, lambda i: (0, 0, 0)),
                  pl.BlockSpec(P.shape, lambda i: (0, 0)),
                  pl.BlockSpec(S.shape, lambda i: (0, 0)),
                  pl.BlockSpec(St.shape, lambda i: (0, 0)),
                  pl.BlockSpec(gamma_t.shape, lambda i: (0, 0)),
                  pl.BlockSpec(beta_t.shape, lambda i: (0, 0))],
        out_specs=pl.BlockSpec((B, DM), lambda i: (0, 0)),
        compiler_params=pltpu.CompilerParams(dimension_semantics=("arbitrary",)),
    )(pose, w_r, nvp_t, P, S, St, gamma_t, beta_t)
    return out_flat.reshape(B, out_n, sd * sd)


# -------------------------------- CapsuleFC ----------------------------------

class CapsuleFCPallas:
    def __init__(self, key, in_n_capsules, in_d_capsules, out_n_capsules,
                 out_d_capsules, gap=False):
        self.in_n = in_n_capsules
        self.in_d = in_d_capsules
        self.out_n = out_n_capsules
        self.out_d = out_d_capsules
        self.use_gap = gap
        self.sqrt_d = int(np.sqrt(in_d_capsules))
        sd = self.sqrt_d
        assert sd * sd == in_d_capsules
        # The torch module's (a,d) -> out_d view requires out_d == sqrt_d**2.
        assert sd * sd == out_d_capsules
        # TODO(synk): the out_d==1 (skip-LayerNorm) corner case is not implemented.

        self.weight_init_const = float(np.sqrt(out_n_capsules / (sd * in_n_capsules)))
        self.w = self.weight_init_const * jax.random.normal(
            key, (in_n_capsules, sd, sd, out_n_capsules), jnp.float32)
        self.gamma = jnp.ones((out_d_capsules,), jnp.float32)   # LayerNorm weight
        self.beta = jnp.zeros((out_d_capsules,), jnp.float32)   # LayerNorm bias
        self.scale = 1.0 / out_d_capsules ** 0.5

        # ---- one-time rearrangements (no per-call transposes feed the kernels) ----
        # w_r[x, n, d*M + m] = w[n, x, d, m]
        self.w_r = jnp.transpose(self.w, (1, 0, 2, 3)).reshape(
            sd, in_n_capsules, sd * out_n_capsules)
        M = out_n_capsules
        DM = M * sd * sd
        # Lane permutation (a,d,m) -> (m,a,d).
        P = np.zeros((DM, DM), np.float32)
        for a in range(sd):
            for d in range(sd):
                for m in range(M):
                    P[a * sd * M + d * M + m, m * sd * sd + a * sd + d] = 1.0
        # Segment-sum matrix for grouped (per output capsule) LayerNorm stats.
        S = np.zeros((DM, M), np.float32)
        for c in range(DM):
            S[c, c // (sd * sd)] = 1.0
        self.P = jnp.asarray(P)
        self.S = jnp.asarray(S)
        self.St = jnp.asarray(np.ascontiguousarray(S.T))
        self.gamma_t = jnp.tile(self.gamma, (M,)).reshape(1, DM)
        self.beta_t = jnp.tile(self.beta, (M,)).reshape(1, DM)

    def forward(self, x, num_iter, next_capsule_value=None):
        del num_iter  # unused inside forward, as in the reference module
        if next_capsule_value is None:
            return _forward_uniform(x, self.w_r, self.P, self.S, self.St,
                                    self.gamma_t, self.beta_t,
                                    out_n=self.out_n, sd=self.sqrt_d,
                                    use_gap=self.use_gap)
        return _forward_refine(x, next_capsule_value, self.w_r, self.P, self.S,
                               self.St, self.gamma_t, self.beta_t,
                               out_n=self.out_n, sd=self.sqrt_d,
                               use_gap=self.use_gap)


# ----------------------------- pure-JAX reference ----------------------------

def reference_forward(mod, x, next_capsule_value=None):
    sd = mod.sqrt_d
    if mod.use_gap and x.ndim == 4:
        x = jnp.mean(x, axis=2)
    if x.ndim == 4:
        b, d1, d2, d3 = x.shape
        x = jnp.transpose(x, (0, 3, 1, 2)).reshape(b, d3, d1 * d2)
        x = jnp.transpose(x, (0, 2, 1))
    pose = x
    B, N, _ = pose.shape
    _pose = pose.reshape(B, N, sd, sd)
    w = mod.w
    if next_capsule_value is None:
        qk = jnp.full((N, mod.out_n), 1.0 / mod.out_n, jnp.float32)
        nv = jnp.einsum('nm,bnax,nxdm->bmad', qk, _pose, w)
    else:
        nvp = next_capsule_value.reshape(B, mod.out_n, sd, sd)
        logits = jnp.einsum('bnax,nxdm,bmad->bnm', _pose, w, nvp) * mod.scale
        qk = jax.nn.softmax(logits, axis=2)
        qk = qk / (jnp.sum(qk, axis=2, keepdims=True) + 1e-10)
        nv = jnp.einsum('bnm,bnax,nxdm->bmad', qk, _pose, w)
    if nv.shape[-1] != 1:
        nv = nv.reshape(B, mod.out_n, mod.out_d)
        mean = jnp.mean(nv, axis=-1, keepdims=True)
        var = jnp.mean((nv - mean) ** 2, axis=-1, keepdims=True)
        nv = (nv - mean) / jnp.sqrt(var + 1e-5) * mod.gamma + mod.beta
    return nv


# ----------------------------------- main ------------------------------------

if __name__ == "__main__":
    key = jax.random.PRNGKey(0)
    k_w, k_x = jax.random.split(key)

    B, d1, d2, C = 2, 2, 4, 16          # 4-D input (B, d1, d2, C)
    in_n, in_d = d1 * d2, C             # 8 input capsules of dim 16 (sqrt_d = 4)
    out_n, out_d = 8, 16                # 8 output capsules of dim 16

    mod = CapsuleFCPallas(k_w, in_n, in_d, out_n, out_d, gap=False)
    x = jax.random.normal(k_x, (B, d1, d2, C), jnp.float32)

    out1 = mod.forward(x, num_iter=0)                            # uniform routing pass
    out2 = mod.forward(x, num_iter=1, next_capsule_value=out1)   # refinement pass
    jax.block_until_ready((out1, out2))

    ref1 = reference_forward(mod, x)
    ref2 = reference_forward(mod, x, next_capsule_value=out1)
    np.testing.assert_allclose(np.asarray(out1), np.asarray(ref1), rtol=2e-2, atol=2e-2)
    np.testing.assert_allclose(np.asarray(out2), np.asarray(ref2), rtol=2e-2, atol=2e-2)
    assert out1.shape == (B, out_n, out_d) and out2.shape == (B, out_n, out_d)

    print("KERNEL_OK")
</pallas_src>

<mosaic_0001>
module attributes {stable_mosaic.version = 11 : i64} {
  func.func @_uniform_kernel(%arg0: i32, %arg1: memref<2x8x16xf32, #tpu.memory_space<vmem>>, %arg2: memref<4x8x32xf32, #tpu.memory_space<vmem>>, %arg3: memref<128x128xf32, #tpu.memory_space<vmem>>, %arg4: memref<128x8xf32, #tpu.memory_space<vmem>>, %arg5: memref<8x128xf32, #tpu.memory_space<vmem>>, %arg6: memref<1x128xf32, #tpu.memory_space<vmem>>, %arg7: memref<1x128xf32, #tpu.memory_space<vmem>>, %arg8: memref<2x128xf32, #tpu.memory_space<vmem>>) attributes {dimension_semantics = [#tpu.dimension_semantics<arbitrary>], iteration_bounds = array<i64: 1>, scalar_prefetch = 0 : i64, scratch_operands = 0 : i64, tpu.core_type = #tpu.core_type<tc>, window_params = [{pipeline_mode = #tpu.pipeline_mode<synchronous>, transform_indices = @transform_0, window_bounds = array<i64: 2, 8, 16>}, {pipeline_mode = #tpu.pipeline_mode<synchronous>, transform_indices = @transform_1, window_bounds = array<i64: 4, 8, 32>}, {pipeline_mode = #tpu.pipeline_mode<synchronous>, transform_indices = @transform_2, window_bounds = array<i64: 128, 128>}, {pipeline_mode = #tpu.pipeline_mode<synchronous>, transform_indices = @transform_3, window_bounds = array<i64: 128, 8>}, {pipeline_mode = #tpu.pipeline_mode<synchronous>, transform_indices = @transform_4, window_bounds = array<i64: 8, 128>}, {pipeline_mode = #tpu.pipeline_mode<synchronous>, transform_indices = @transform_5, window_bounds = array<i64: 1, 128>}, {pipeline_mode = #tpu.pipeline_mode<synchronous>, transform_indices = @transform_6, window_bounds = array<i64: 1, 128>}, {pipeline_mode = #tpu.pipeline_mode<synchronous>, transform_indices = @transform_7, window_bounds = array<i64: 2, 128>}]} {
    %c0 = arith.constant 0 : index
    %c0_0 = arith.constant 0 : index
    %c0_1 = arith.constant 0 : index
    %0 = vector.load %arg1[%c0, %c0_0, %c0_1] : memref<2x8x16xf32, #tpu.memory_space<vmem>>, vector<2x8x16xf32>
    %c0_2 = arith.constant 0 : index
    %c0_3 = arith.constant 0 : index
    %c0_4 = arith.constant 0 : index
    %1 = vector.load %arg2[%c0_2, %c0_3, %c0_4] : memref<4x8x32xf32, #tpu.memory_space<vmem>>, vector<4x8x32xf32>
    %2 = vector.extract_strided_slice %0 {offsets = [0, 0, 0], sizes = [2, 8, 1], strides = [1, 1, 1]} : vector<2x8x16xf32> to vector<2x8x1xf32>
    %3 = vector.extract_strided_slice %1 {offsets = [0, 0, 0], sizes = [1, 8, 32], strides = [1, 1, 1]} : vector<4x8x32xf32> to vector<1x8x32xf32>
    %4 = vector.broadcast %2 : vector<2x8x1xf32> to vector<2x8x32xf32>
    %5 = vector.broadcast %3 : vector<1x8x32xf32> to vector<2x8x32xf32>
    %6 = arith.mulf %4, %5 : vector<2x8x32xf32>
    %7 = vector.extract_strided_slice %0 {offsets = [0, 0, 1], sizes = [2, 8, 1], strides = [1, 1, 1]} : vector<2x8x16xf32> to vector<2x8x1xf32>
    %8 = vector.extract_strided_slice %1 {offsets = [1, 0, 0], sizes = [1, 8, 32], strides = [1, 1, 1]} : vector<4x8x32xf32> to vector<1x8x32xf32>
    %9 = vector.broadcast %7 : vector<2x8x1xf32> to vector<2x8x32xf32>
    %10 = vector.broadcast %8 : vector<1x8x32xf32> to vector<2x8x32xf32>
    %11 = arith.mulf %9, %10 : vector<2x8x32xf32>
    %12 = arith.addf %6, %11 : vector<2x8x32xf32>
    %13 = vector.extract_strided_slice %0 {offsets = [0, 0, 2], sizes = [2, 8, 1], strides = [1, 1, 1]} : vector<2x8x16xf32> to vector<2x8x1xf32>
    %14 = vector.extract_strided_slice %1 {offsets = [2, 0, 0], sizes = [1, 8, 32], strides = [1, 1, 1]} : vector<4x8x32xf32> to vector<1x8x32xf32>
    %15 = vector.broadcast %13 : vector<2x8x1xf32> to vector<2x8x32xf32>
    %16 = vector.broadcast %14 : vector<1x8x32xf32> to vector<2x8x32xf32>
    %17 = arith.mulf %15, %16 : vector<2x8x32xf32>
    %18 = arith.addf %12, %17 : vector<2x8x32xf32>
    %19 = vector.extract_strided_slice %0 {offsets = [0, 0, 3], sizes = [2, 8, 1], strides = [1, 1, 1]} : vector<2x8x16xf32> to vector<2x8x1xf32>
    %20 = vector.extract_strided_slice %1 {offsets = [3, 0, 0], sizes = [1, 8, 32], strides = [1, 1, 1]} : vector<4x8x32xf32> to vector<1x8x32xf32>
    %21 = vector.broadcast %19 : vector<2x8x1xf32> to vector<2x8x32xf32>
    %22 = vector.broadcast %20 : vector<1x8x32xf32> to vector<2x8x32xf32>
    %23 = arith.mulf %21, %22 : vector<2x8x32xf32>
    %24 = arith.addf %18, %23 : vector<2x8x32xf32>
    %25 = vector.extract_strided_slice %0 {offsets = [0, 0, 4], sizes = [2, 8, 1], strides = [1, 1, 1]} : vector<2x8x16xf32> to vector<2x8x1xf32>
    %26 = vector.extract_strided_slice %1 {offsets = [0, 0, 0], sizes = [1, 8, 32], strides = [1, 1, 1]} : vector<4x8x32xf32> to vector<1x8x32xf32>
    %27 = vector.broadcast %25 : vector<2x8x1xf32> to vector<2x8x32xf32>
    %28 = vector.broadcast %26 : vector<1x8x32xf32> to vector<2x8x32xf32>
    %29 = arith.mulf %27, %28 : vector<2x8x32xf32>
    %30 = vector.extract_strided_slice %0 {offsets = [0, 0, 5], sizes = [2, 8, 1], strides = [1, 1, 1]} : vector<2x8x16xf32> to vector<2x8x1xf32>
    %31 = vector.extract_strided_slice %1 {offsets = [1, 0, 0], sizes = [1, 8, 32], strides = [1, 1, 1]} : vector<4x8x32xf32> to vector<1x8x32xf32>
    %32 = vector.broadcast %30 : vector<2x8x1xf32> to vector<2x8x32xf32>
    %33 = vector.broadcast %31 : vector<1x8x32xf32> to vector<2x8x32xf32>
    %34 = arith.mulf %32, %33 : vector<2x8x32xf32>
    %35 = arith.addf %29, %34 : vector<2x8x32xf32>
    %36 = vector.extract_strided_slice %0 {offsets = [0, 0, 6], sizes = [2, 8, 1], strides = [1, 1, 1]} : vector<2x8x16xf32> to vector<2x8x1xf32>
    %37 = vector.extract_strided_slice %1 {offsets = [2, 0, 0], sizes = [1, 8, 32], strides = [1, 1, 1]} : vector<4x8x32xf32> to vector<1x8x32xf32>
    %38 = vector.broadcast %36 : vector<2x8x1xf32> to vector<2x8x32xf32>
    %39 = vector.broadcast %37 : vector<1x8x32xf32> to vector<2x8x32xf32>
    %40 = arith.mulf %38, %39 : vector<2x8x32xf32>
    %41 = arith.addf %35, %40 : vector<2x8x32xf32>
    %42 = vector.extract_strided_slice %0 {offsets = [0, 0, 7], sizes = [2, 8, 1], strides = [1, 1, 1]} : vector<2x8x16xf32> to vector<2x8x1xf32>
    %43 = vector.extract_strided_slice %1 {offsets = [3, 0, 0], sizes = [1, 8, 32], strides = [1, 1, 1]} : vector<4x8x32xf32> to vector<1x8x32xf32>
    %44 = vector.broadcast %42 : vector<2x8x1xf32> to vector<2x8x32xf32>
    %45 = vector.broadcast %43 : vector<1x8x32xf32> to vector<2x8x32xf32>
    %46 = arith.mulf %44, %45 : vector<2x8x32xf32>
    %47 = arith.addf %41, %46 : vector<2x8x32xf32>
    %48 = vector.extract_strided_slice %0 {offsets = [0, 0, 8], sizes = [2, 8, 1], strides = [1, 1, 1]} : vector<2x8x16xf32> to vector<2x8x1xf32>
    %49 = vector.extract_strided_slice %1 {offsets = [0, 0, 0], sizes = [1, 8, 32], strides = [1, 1, 1]} : vector<4x8x32xf32> to vector<1x8x32xf32>
    %50 = vector.broadcast %48 : vector<2x8x1xf32> to vector<2x8x32xf32>
    %51 = vector.broadcast %49 : vector<1x8x32xf32> to vector<2x8x32xf32>
    %52 = arith.mulf %50, %51 : vector<2x8x32xf32>
    %53 = vector.extract_strided_slice %0 {offsets = [0, 0, 9], sizes = [2, 8, 1], strides = [1, 1, 1]} : vector<2x8x16xf32> to vector<2x8x1xf32>
    %54 = vector.extract_strided_slice %1 {offsets = [1, 0, 0], sizes = [1, 8, 32], strides = [1, 1, 1]} : vector<4x8x32xf32> to vector<1x8x32xf32>
    %55 = vector.broadcast %53 : vector<2x8x1xf32> to vector<2x8x32xf32>
    %56 = vector.broadcast %54 : vector<1x8x32xf32> to vector<2x8x32xf32>
    %57 = arith.mulf %55, %56 : vector<2x8x32xf32>
    %58 = arith.addf %52, %57 : vector<2x8x32xf32>
    %59 = vector.extract_strided_slice %0 {offsets = [0, 0, 10], sizes = [2, 8, 1], strides = [1, 1, 1]} : vector<2x8x16xf32> to vector<2x8x1xf32>
    %60 = vector.extract_strided_slice %1 {offsets = [2, 0, 0], sizes = [1, 8, 32], strides = [1, 1, 1]} : vector<4x8x32xf32> to vector<1x8x32xf32>
    %61 = vector.broadcast %59 : vector<2x8x1xf32> to vector<2x8x32xf32>
    %62 = vector.broadcast %60 : vector<1x8x32xf32> to vector<2x8x32xf32>
    %63 = arith.mulf %61, %62 : vector<2x8x32xf32>
    %64 = arith.addf %58, %63 : vector<2x8x32xf32>
    %65 = vector.extract_strided_slice %0 {offsets = [0, 0, 11], sizes = [2, 8, 1], strides = [1, 1, 1]} : vector<2x8x16xf32> to vector<2x8x1xf32>
    %66 = vector.extract_strided_slice %1 {offsets = [3, 0, 0], sizes = [1, 8, 32], strides = [1, 1, 1]} : vector<4x8x32xf32> to vector<1x8x32xf32>
    %67 = vector.broadcast %65 : vector<2x8x1xf32> to vector<2x8x32xf32>
    %68 = vector.broadcast %66 : vector<1x8x32xf32> to vector<2x8x32xf32>
    %69 = arith.mulf %67, %68 : vector<2x8x32xf32>
    %70 = arith.addf %64, %69 : vector<2x8x32xf32>
    %71 = vector.extract_strided_slice %0 {offsets = [0, 0, 12], sizes = [2, 8, 1], strides = [1, 1, 1]} : vector<2x8x16xf32> to vector<2x8x1xf32>
    %72 = vector.extract_strided_slice %1 {offsets = [0, 0, 0], sizes = [1, 8, 32], strides = [1, 1, 1]} : vector<4x8x32xf32> to vector<1x8x32xf32>
    %73 = vector.broadcast %71 : vector<2x8x1xf32> to vector<2x8x32xf32>
    %74 = vector.broadcast %72 : vector<1x8x32xf32> to vector<2x8x32xf32>
    %75 = arith.mulf %73, %74 : vector<2x8x32xf32>
    %76 = vector.extract_strided_slice %0 {offsets = [0, 0, 13], sizes = [2, 8, 1], strides = [1, 1, 1]} : vector<2x8x16xf32> to vector<2x8x1xf32>
    %77 = vector.extract_strided_slice %1 {offsets = [1, 0, 0], sizes = [1, 8, 32], strides = [1, 1, 1]} : vector<4x8x32xf32> to vector<1x8x32xf32>
    %78 = vector.broadcast %76 : vector<2x8x1xf32> to vector<2x8x32xf32>
    %79 = vector.broadcast %77 : vector<1x8x32xf32> to vector<2x8x32xf32>
    %80 = arith.mulf %78, %79 : vector<2x8x32xf32>
    %81 = arith.addf %75, %80 : vector<2x8x32xf32>
    %82 = vector.extract_strided_slice %0 {offsets = [0, 0, 14], sizes = [2, 8, 1], strides = [1, 1, 1]} : vector<2x8x16xf32> to vector<2x8x1xf32>
    %83 = vector.extract_strided_slice %1 {offsets = [2, 0, 0], sizes = [1, 8, 32], strides = [1, 1, 1]} : vector<4x8x32xf32> to vector<1x8x32xf32>
    %84 = vector.broadcast %82 : vector<2x8x1xf32> to vector<2x8x32xf32>
    %85 = vector.broadcast %83 : vector<1x8x32xf32> to vector<2x8x32xf32>
    %86 = arith.mulf %84, %85 : vector<2x8x32xf32>
    %87 = arith.addf %81, %86 : vector<2x8x32xf32>
    %88 = vector.extract_strided_slice %0 {offsets = [0, 0, 15], sizes = [2, 8, 1], strides = [1, 1, 1]} : vector<2x8x16xf32> to vector<2x8x1xf32>
    %89 = vector.extract_strided_slice %1 {offsets = [3, 0, 0], sizes = [1, 8, 32], strides = [1, 1, 1]} : vector<4x8x32xf32> to vector<1x8x32xf32>
    %90 = vector.broadcast %88 : vector<2x8x1xf32> to vector<2x8x32xf32>
    %91 = vector.broadcast %89 : vector<1x8x32xf32> to vector<2x8x32xf32>
    %92 = arith.mulf %90, %91 : vector<2x8x32xf32>
    %93 = arith.addf %87, %92 : vector<2x8x32xf32>
    %cst = arith.constant dense<0.000000e+00> : vector<2x32xf32>
    %94 = vector.multi_reduction <add>, %24, %cst [1] : vector<2x8x32xf32> to vector<2x32xf32>
    %cst_5 = arith.constant 1.250000e-01 : f32
    %95 = vector.broadcast %cst_5 : f32 to vector<2x32xf32>
    %96 = arith.mulf %94, %95 : vector<2x32xf32>
    %cst_6 = arith.constant dense<0.000000e+00> : vector<2x32xf32>
    %97 = vector.multi_reduction <add>, %47, %cst_6 [1] : vector<2x8x32xf32> to vector<2x32xf32>
    %cst_7 = arith.constant 1.250000e-01 : f32
    %98 = vector.broadcast %cst_7 : f32 to vector<2x32xf32>
    %99 = arith.mulf %97, %98 : vector<2x32xf32>
    %cst_8 = arith.constant dense<0.000000e+00> : vector<2x32xf32>
    %100 = vector.multi_reduction <add>, %70, %cst_8 [1] : vector<2x8x32xf32> to vector<2x32xf32>
    %cst_9 = arith.constant 1.250000e-01 : f32
    %101 = vector.broadcast %cst_9 : f32 to vector<2x32xf32>
    %102 = arith.mulf %100, %101 : vector<2x32xf32>
    %cst_10 = arith.constant dense<0.000000e+00> : vector<2x32xf32>
    %103 = vector.multi_reduction <add>, %93, %cst_10 [1] : vector<2x8x32xf32> to vector<2x32xf32>
    %cst_11 = arith.constant 1.250000e-01 : f32
    %104 = vector.broadcast %cst_11 : f32 to vector<2x32xf32>
    %105 = arith.mulf %103, %104 : vector<2x32xf32>
    %c0_12 = arith.constant 0 : index
    %c0_13 = arith.constant 0 : index
    %106 = vector.load %arg3[%c0_12, %c0_13] : memref<128x128xf32, #tpu.memory_space<vmem>>, vector<128x128xf32>
    %c0_14 = arith.constant 0 : index
    %c0_15 = arith.constant 0 : index
    %107 = vector.load %arg4[%c0_14, %c0_15] : memref<128x8xf32, #tpu.memory_space<vmem>>, vector<128x8xf32>
    %c0_16 = arith.constant 0 : index
    %c0_17 = arith.constant 0 : index
    %108 = vector.load %arg5[%c0_16, %c0_17] : memref<8x128xf32, #tpu.memory_space<vmem>>, vector<8x128xf32>
    %c0_18 = arith.constant 0 : index
    %c0_19 = arith.constant 0 : index
    %109 = vector.load %arg6[%c0_18, %c0_19] : memref<1x128xf32, #tpu.memory_space<vmem>>, vector<1x128xf32>
    %c0_20 = arith.constant 0 : index
    %c0_21 = arith.constant 0 : index
    %110 = vector.load %arg7[%c0_20, %c0_21] : memref<1x128xf32, #tpu.memory_space<vmem>>, vector<1x128xf32>
    %111 = tpu.concatenate %96, %99, %102, %105 in 1 : vector<2x32xf32>, vector<2x32xf32>, vector<2x32xf32>, vector<2x32xf32> -> vector<2x128xf32>
    %cst_22 = arith.constant dense<0.000000e+00> : vector<2x128xf32>
    %112 = tpu.matmul %111, %106, %cst_22 {dimension_numbers = #tpu.dot_dimension_numbers<[1], [0], [0], [1], [0, 0, 1, 1], [], []>} : vector<2x128xf32>, vector<128x128xf32>, vector<2x128xf32> -> vector<2x128xf32>
    %cst_23 = arith.constant dense<0.000000e+00> : vector<2x8xf32>
    %113 = tpu.matmul %112, %107, %cst_23 {dimension_numbers = #tpu.dot_dimension_numbers<[1], [0], [0], [1], [0, 0, 1, 1], [], []>} : vector<2x128xf32>, vector<128x8xf32>, vector<2x8xf32> -> vector<2x8xf32>
    %cst_24 = arith.constant 6.250000e-02 : f32
    %114 = vector.broadcast %cst_24 : f32 to vector<2x8xf32>
    %115 = arith.mulf %113, %114 : vector<2x8xf32>
    %cst_25 = arith.constant dense<0.000000e+00> : vector<2x128xf32>
    %116 = tpu.matmul %115, %108, %cst_25 {dimension_numbers = #tpu.dot_dimension_numbers<[1], [0], [0], [1], [0, 0, 1, 1], [], []>} : vector<2x8xf32>, vector<8x128xf32>, vector<2x128xf32> -> vector<2x128xf32>
    %117 = arith.subf %112, %116 : vector<2x128xf32>
    %118 = arith.mulf %117, %117 : vector<2x128xf32>
    %cst_26 = arith.constant dense<0.000000e+00> : vector<2x8xf32>
    %119 = tpu.matmul %118, %107, %cst_26 {dimension_numbers = #tpu.dot_dimension_numbers<[1], [0], [0], [1], [0, 0, 1, 1], [], []>} : vector<2x128xf32>, vector<128x8xf32>, vector<2x8xf32> -> vector<2x8xf32>
    %cst_27 = arith.constant 6.250000e-02 : f32
    %120 = vector.broadcast %cst_27 : f32 to vector<2x8xf32>
    %121 = arith.mulf %119, %120 : vector<2x8xf32>
    %cst_28 = arith.constant dense<0.000000e+00> : vector<2x128xf32>
    %122 = tpu.matmul %121, %108, %cst_28 {dimension_numbers = #tpu.dot_dimension_numbers<[1], [0], [0], [1], [0, 0, 1, 1], [], []>} : vector<2x8xf32>, vector<8x128xf32>, vector<2x128xf32> -> vector<2x128xf32>
    %cst_29 = arith.constant 9.99999974E-6 : f32
    %123 = vector.broadcast %cst_29 : f32 to vector<2x128xf32>
    %124 = arith.addf %122, %123 : vector<2x128xf32>
    %125 = math.rsqrt %124 : vector<2x128xf32>
    %126 = arith.mulf %117, %125 : vector<2x128xf32>
    %127 = vector.broadcast %109 : vector<1x128xf32> to vector<2x128xf32>
    %128 = arith.mulf %126, %127 : vector<2x128xf32>
    %129 = vector.broadcast %110 : vector<1x128xf32> to vector<2x128xf32>
    %130 = arith.addf %128, %129 : vector<2x128xf32>
    %c0_30 = arith.constant 0 : index
    %c0_31 = arith.constant 0 : index
    %131 = vector.load %arg8[%c0_30, %c0_31] : memref<2x128xf32, #tpu.memory_space<vmem>>, vector<2x128xf32>
    tpu.vector_store %arg8[%c0_30, %c0_31], %130 {strides = array<i32>} : memref<2x128xf32, #tpu.memory_space<vmem>>, vector<2x128xf32>,
    return
  }
  func.func @transform_0(%arg0: i32) -> (i32, i32, i32) {
    %c0_i32 = arith.constant 0 : i32
    %c0_i32_0 = arith.constant 0 : i32
    %c0_i32_1 = arith.constant 0 : i32
    %c0_i32_2 = arith.constant 0 : i32
    return %c0_i32, %c0_i32_0, %c0_i32_1 : i32, i32, i32
  }
  func.func @transform_1(%arg0: i32) -> (i32, i32, i32) {
    %c0_i32 = arith.constant 0 : i32
    %c0_i32_0 = arith.constant 0 : i32
    %c0_i32_1 = arith.constant 0 : i32
    %c0_i32_2 = arith.constant 0 : i32
    return %c0_i32, %c0_i32_0, %c0_i32_1 : i32, i32, i32
  }
  func.func @transform_2(%arg0: i32) -> (i32, i32) {
    %c0_i32 = arith.constant 0 : i32
    %c0_i32_0 = arith.constant 0 : i32
    %c0_i32_1 = arith.constant 0 : i32
    return %c0_i32, %c0_i32_0 : i32, i32
  }
  func.func @transform_3(%arg0: i32) -> (i32, i32) {
    %c0_i32 = arith.constant 0 : i32
    %c0_i32_0 = arith.constant 0 : i32
    %c0_i32_1 = arith.constant 0 : i32
    return %c0_i32, %c0_i32_0 : i32, i32
  }
  func.func @transform_4(%arg0: i32) -> (i32, i32) {
    %c0_i32 = arith.constant 0 : i32
    %c0_i32_0 = arith.constant 0 : i32
    %c0_i32_1 = arith.constant 0 : i32
    return %c0_i32, %c0_i32_0 : i32, i32
  }
  func.func @transform_5(%arg0: i32) -> (i32, i32) {
    %c0_i32 = arith.constant 0 : i32
    %c0_i32_0 = arith.constant 0 : i32
    %c0_i32_1 = arith.constant 0 : i32
    return %c0_i32, %c0_i32_0 : i32, i32
  }
  func.func @transform_6(%arg0: i32) -> (i32, i32) {
    %c0_i32 = arith.constant 0 : i32
    %c0_i32_0 = arith.constant 0 : i32
    %c0_i32_1 = arith.constant 0 : i32
    return %c0_i32, %c0_i32_0 : i32, i32
  }
  func.func @transform_7(%arg0: i32) -> (i32, i32) {
    %c0_i32 = arith.constant 0 : i32
    %c0_i32_0 = arith.constant 0 : i32
    %c0_i32_1 = arith.constant 0 : i32
    return %c0_i32, %c0_i32_0 : i32, i32
  }
}

</mosaic_0001>

<llo_original>
// kernel: _forward_uniform.1
$region0: #{_forward_uniform.1}
  #allocation0 [shape = 'u32[]', space=smem, size = 0x4, offset = 0x4, fixed_abs, tag = 'smem constant byte address 0x4 - core index']
  #allocation1 [shape = 'u32[72,128]{1,0:T(1,128)}', space=vmem, size = 0x9000, scoped, tag = 'internal scratch']
  %s0 = inlined_call_operand.hbm [shape: f32[2,8,16], index: 0, kind: input, shape index: {}]
  %s1 = inlined_call_operand.hbm [shape: f32[4,8,32], index: 1, kind: input, shape index: {}]
  %s2 = inlined_call_operand.vmem [shape: f32[128,128], index: 2, kind: input, shape index: {}]
  %s3 = inlined_call_operand.vmem [shape: f32[128,8], index: 3, kind: input, shape index: {}]
  %s4 = inlined_call_operand.vmem [shape: f32[8,128], index: 4, kind: input, shape index: {}]
  %s5 = inlined_call_operand.vmem [shape: f32[1,128], index: 5, kind: input, shape index: {}]
  %s6 = inlined_call_operand.vmem [shape: f32[1,128], index: 6, kind: input, shape index: {}]
  %s7 = inlined_call_operand.vmem [shape: f32[2,128], index: 7, kind: output, shape index: {}]
  %s8 = sld [smem:[#allocation0]]
  $region46: #{_forward_uniform.1} parent=0
    _
  %s10 = ssub.s32 1, %s8
  %s11 = scalar_select 0, %s10, %s8
  $region1: #{_forward_uniform.1} parent=0
    #allocation2 [shape = 'u8[8192]{0}', space=vmem, size = 0x2000, scoped, tag = 'input window, operand 0, single buffered']
    #allocation3 [shape = 's32[1]{0}', space=sflag, size = 0x4, scoped, tag = 'scoped memory for _forward_uniform.1']
    #allocation4 [shape = 'u8[16384]{0}', space=vmem, size = 0x4000, scoped, tag = 'input window, operand 1, single buffered']
    #allocation5 [shape = 's32[1]{0}', space=sflag, size = 0x4, scoped, tag = 'scoped memory for _forward_uniform.1']
    %12 = vsyncpa [#allocation3], 0
    %13 = vsyncpa [#allocation5], 0
    // Predicated region
    $region2: #{_forward_uniform.1} parent=1 // pred_check
      _
    $region3: #{_forward_uniform.1} parent=1 // pred_check_branch
      %15 = sbr.rel (0) target = $region5
    $region4: #{_forward_uniform.1} parent=1 // pred_region
      %17 = vsyncadd [#allocation3], 0
      %s18 = sshll.u32 %s0, 4
      %s19 = int_to_ptr.hbm [resolvable:$true] %s18
      %s20 = sshll.u32 [#allocation2], 4
      %s21 = int_to_ptr.vmem [resolvable:$true] %s20
      %26 = dma.hbm_to_vmem [thread:$0]  %s19, 256, %s21, [#allocation3], 128, 128, 8
    $region5: #{_forward_uniform.1} parent=1 // pred_fallthru
      _
    // Predicated region
    $region6: #{_forward_uniform.1} parent=1 // pred_check
      _
    $region7: #{_forward_uniform.1} parent=1 // pred_check_branch
      %28 = sbr.rel (0) target = $region9
    $region8: #{_forward_uniform.1} parent=1 // pred_region
      %30 = vsyncadd [#allocation5], 0
      %s31 = sshll.u32 %s1, 4
      %s32 = int_to_ptr.hbm [resolvable:$true] %s31
      %s33 = sshll.u32 [#allocation4], 4
      %s34 = int_to_ptr.vmem [resolvable:$true] %s33
      %39 = dma.hbm_to_vmem [thread:$0]  %s32, 512, %s34, [#allocation5], 128, 128, 8
    $region9: #{_forward_uniform.1} parent=1 // pred_fallthru
      _
    // Predicated region
    $region10: #{_forward_uniform.1} parent=1 // pred_check
      _
    $region11: #{_forward_uniform.1} parent=1 // pred_check_branch
      %41 = sbr.rel (0) target = $region13
    $region12: #{_forward_uniform.1} parent=1 // pred_region
      _
    $region13: #{_forward_uniform.1} parent=1 // pred_fallthru
      _
    // Predicated region
    $region14: #{_forward_uniform.1} parent=1 // pred_check
      _
    $region15: #{_forward_uniform.1} parent=1 // pred_check_branch
      %43 = sbr.rel (0) target = $region17
    $region16: #{_forward_uniform.1} parent=1 // pred_region
      _
    $region17: #{_forward_uniform.1} parent=1 // pred_fallthru
      _
    // Predicated region
    $region18: #{_forward_uniform.1} parent=1 // pred_check
      _
    $region19: #{_forward_uniform.1} parent=1 // pred_check_branch
      %45 = sbr.rel (0) target = $region21
    $region20: #{_forward_uniform.1} parent=1 // pred_region
      _
    $region21: #{_forward_uniform.1} parent=1 // pred_fallthru
      _
    // Predicated region
    $region22: #{_forward_uniform.1} parent=1 // pred_check
      _
    $region23: #{_forward_uniform.1} parent=1 // pred_check_branch
      %47 = sbr.rel (0) target = $region25
    $region24: #{_forward_uniform.1} parent=1 // pred_region
      _
    $region25: #{_forward_uniform.1} parent=1 // pred_fallthru
      _
    // Predicated region
    $region26: #{_forward_uniform.1} parent=1 // pred_check
      _
    $region27: #{_forward_uniform.1} parent=1 // pred_check_branch
      %49 = sbr.rel (0) target = $region29
    $region28: #{_forward_uniform.1} parent=1 // pred_region
      _
    $region29: #{_forward_uniform.1} parent=1 // pred_fallthru
      _
    // Predicated region
    $region30: #{_forward_uniform.1} parent=1 // pred_check
      _
    $region31: #{_forward_uniform.1} parent=1 // pred_check_branch
      %51 = sbr.rel (0) target = $region33
    $region32: #{_forward_uniform.1} parent=1 // pred_region
      %53 = dma.done [#allocation3], 256
    $region33: #{_forward_uniform.1} parent=1 // pred_fallthru
      _
    // Predicated region
    $region34: #{_forward_uniform.1} parent=1 // pred_check
      _
    $region35: #{_forward_uniform.1} parent=1 // pred_check_branch
      %55 = sbr.rel (0) target = $region37
    $region36: #{_forward_uniform.1} parent=1 // pred_region
      %57 = dma.done [#allocation5], 512
    $region37: #{_forward_uniform.1} parent=1 // pred_fallthru
      _
    %v58 = vld [vmem:[#allocation2] sm:$0xff]
    %v59 = vld [vmem:[#allocation2 + $0x8] sm:$0xff]
    %v60 = vld [vmem:[#allocation4] sm:$0xff]
    %v61 = vld [vmem:[#allocation4 + $0x8] sm:$0xff]
    %v62 = vld [vmem:[#allocation4 + $0x10] sm:$0xff]
    %v63 = vld [vmem:[#allocation4 + $0x18] sm:$0xff]
    %65 = vset.pattern.permute.xlu0 0
    %66 = vperm.xlu0 %65, %v58
    %v67 = vpop.permute.xlu0 %66
    %70 = vset.pattern.permute.xlu0 0
    %71 = vperm.xlu0 %70, %v59
    %v72 = vpop.permute.xlu0 %71
    %v74 = vmul.f32 %v67, %v60
    %v75 = vmul.f32 %v72, %v60
    %76 = vset.pattern.permute.xlu0 1
    %77 = vperm.xlu0 %76, %v58
    %v78 = vpop.permute.xlu0 %77
    %80 = vset.pattern.permute.xlu0 1
    %81 = vperm.xlu0 %80, %v59
    %v82 = vpop.permute.xlu0 %81
    %v84 = vmul.f32 %v78, %v61
    %v85 = vmul.f32 %v82, %v61
    %v86 = vadd.f32 %v74, %v84
    %v87 = vadd.f32 %v75, %v85
    %88 = vset.pattern.permute.xlu0 2
    %89 = vperm.xlu0 %88, %v58
    %v90 = vpop.permute.xlu0 %89
    %92 = vset.pattern.permute.xlu0 2
    %93 = vperm.xlu0 %92, %v59
    %v94 = vpop.permute.xlu0 %93
    %v96 = vmul.f32 %v90, %v62
    %v97 = vmul.f32 %v94, %v62
    %v98 = vadd.f32 %v86, %v96
    %v99 = vadd.f32 %v87, %v97
    %100 = vset.pattern.permute.xlu0 3
    %101 = vperm.xlu0 %100, %v58
    %v102 = vpop.permute.xlu0 %101
    %104 = vset.pattern.permute.xlu0 3
    %105 = vperm.xlu0 %104, %v59
    %v106 = vpop.permute.xlu0 %105
    %v108 = vmul.f32 %v102, %v63
    %v109 = vmul.f32 %v106, %v63
    %v110 = vadd.f32 %v98, %v108
    %v111 = vadd.f32 %v99, %v109
    %112 = vset.pattern.permute.xlu0 4
    %113 = vperm.xlu0 %112, %v58
    %v114 = vpop.permute.xlu0 %113
    %116 = vset.pattern.permute.xlu0 4
    %117 = vperm.xlu0 %116, %v59
    %v118 = vpop.permute.xlu0 %117
    %v120 = vmul.f32 %v114, %v60
    %v121 = vmul.f32 %v118, %v60
    %122 = vset.pattern.permute.xlu0 5
    %123 = vperm.xlu0 %122, %v58
    %v124 = vpop.permute.xlu0 %123
    %126 = vset.pattern.permute.xlu0 5
    %127 = vperm.xlu0 %126, %v59
    %v128 = vpop.permute.xlu0 %127
    %v130 = vmul.f32 %v124, %v61
    %v131 = vmul.f32 %v128, %v61
    %v132 = vadd.f32 %v120, %v130
    %v133 = vadd.f32 %v121, %v131
    %134 = vset.pattern.permute.xlu0 6
    %135 = vperm.xlu0 %134, %v58
    %v136 = vpop.permute.xlu0 %135
    %138 = vset.pattern.permute.xlu0 6
    %139 = vperm.xlu0 %138, %v59
    %v140 = vpop.permute.xlu0 %139
    %v142 = vmul.f32 %v136, %v62
    %v143 = vmul.f32 %v140, %v62
    %v144 = vadd.f32 %v132, %v142
    %v145 = vadd.f32 %v133, %v143
    %146 = vset.pattern.permute.xlu0 7
    %147 = vperm.xlu0 %146, %v58
    %v148 = vpop.permute.xlu0 %147
    %150 = vset.pattern.permute.xlu0 7
    %151 = vperm.xlu0 %150, %v59
    %v152 = vpop.permute.xlu0 %151
    %v154 = vmul.f32 %v148, %v63
    %v155 = vmul.f32 %v152, %v63
    %v156 = vadd.f32 %v144, %v154
    %v157 = vadd.f32 %v145, %v155
    %158 = vset.pattern.permute.xlu0 8
    %159 = vperm.xlu0 %158, %v58
    %v160 = vpop.permute.xlu0 %159
    %162 = vset.pattern.permute.xlu0 8
    %163 = vperm.xlu0 %162, %v59
    %v164 = vpop.permute.xlu0 %163
    %v166 = vmul.f32 %v160, %v60
    %v167 = vmul.f32 %v164, %v60
    %168 = vset.pattern.permute.xlu0 9
    %169 = vperm.xlu0 %168, %v58
    %v170 = vpop.permute.xlu0 %169
    %172 = vset.pattern.permute.xlu0 9
    %173 = vperm.xlu0 %172, %v59
    %v174 = vpop.permute.xlu0 %173
    %v176 = vmul.f32 %v170, %v61
    %v177 = vmul.f32 %v174, %v61
    %v178 = vadd.f32 %v166, %v176
    %v179 = vadd.f32 %v167, %v177
    %180 = vset.pattern.permute.xlu0 10
    %181 = vperm.xlu0 %180, %v58
    %v182 = vpop.permute.xlu0 %181
    %184 = vset.pattern.permute.xlu0 10
    %185 = vperm.xlu0 %184, %v59
    %v186 = vpop.permute.xlu0 %185
    %v188 = vmul.f32 %v182, %v62
    %v189 = vmul.f32 %v186, %v62
    %v190 = vadd.f32 %v178, %v188
    %v191 = vadd.f32 %v179, %v189
    %192 = vset.pattern.permute.xlu0 11
    %193 = vperm.xlu0 %192, %v58
    %v194 = vpop.permute.xlu0 %193
    %196 = vset.pattern.permute.xlu0 11
    %197 = vperm.xlu0 %196, %v59
    %v198 = vpop.permute.xlu0 %197
    %v200 = vmul.f32 %v194, %v63
    %v201 = vmul.f32 %v198, %v63
    %v202 = vadd.f32 %v190, %v200
    %v203 = vadd.f32 %v191, %v201
    %204 = vset.pattern.permute.xlu0 12
    %205 = vperm.xlu0 %204, %v58
    %v206 = vpop.permute.xlu0 %205
    %208 = vset.pattern.permute.xlu0 12
    %209 = vperm.xlu0 %208, %v59
    %v210 = vpop.permute.xlu0 %209
    %v212 = vmul.f32 %v206, %v60
    %v213 = vmul.f32 %v210, %v60
    %214 = vset.pattern.permute.xlu0 13
    %215 = vperm.xlu0 %214, %v58
    %v216 = vpop.permute.xlu0 %215
    %218 = vset.pattern.permute.xlu0 13
    %219 = vperm.xlu0 %218, %v59
    %v220 = vpop.permute.xlu0 %219
    %v222 = vmul.f32 %v216, %v61
    %v223 = vmul.f32 %v220, %v61
    %v224 = vadd.f32 %v212, %v222
    %v225 = vadd.f32 %v213, %v223
    %226 = vset.pattern.permute.xlu0 14
    %227 = vperm.xlu0 %226, %v58
    %v228 = vpop.permute.xlu0 %227
    %230 = vset.pattern.permute.xlu0 14
    %231 = vperm.xlu0 %230, %v59
    %v232 = vpop.permute.xlu0 %231
    %v234 = vmul.f32 %v228, %v62
    %v235 = vmul.f32 %v232, %v62
    %v236 = vadd.f32 %v224, %v234
    %v237 = vadd.f32 %v225, %v235
    %238 = vset.pattern.permute.xlu0 15
    %239 = vperm.xlu0 %238, %v58
    %v240 = vpop.permute.xlu0 %239
    %242 = vset.pattern.permute.xlu0 15
    %243 = vperm.xlu0 %242, %v59
    %v244 = vpop.permute.xlu0 %243
    %v246 = vmul.f32 %v240, %v63
    %v247 = vmul.f32 %v244, %v63
    %v248 = vadd.f32 %v236, %v246
    %v249 = vadd.f32 %v237, %v247
    %vm250 = vcmask 261120
    %v251 = vsel %vm250, %v110, 0.0
    %v252 = vrot.slane %v251, 4
    %v253 = vadd.f32 %v251, %v252
    %v254 = vrot.slane %v253, 2
    %v255 = vadd.f32 %v253, %v254
    %v256 = vrot.slane %v255, 1
    %v257 = vadd.f32 %v255, %v256
    %v258 = vsel %vm250, %v111, 0.0
    %v259 = vrot.slane %v258, 4
    %v260 = vadd.f32 %v258, %v259
    %v261 = vrot.slane %v260, 2
    %v262 = vadd.f32 %v260, %v261
    %v263 = vrot.slane %v262, 1
    %v264 = vadd.f32 %v262, %v263
    %v265 = vmul.f32 %v257, 0.125
    %v266 = vmul.f32 %v264, 0.125
    %v267 = vsel %vm250, %v156, 0.0
    %v268 = vrot.slane %v267, 4
    %v269 = vadd.f32 %v267, %v268
    %v270 = vrot.slane %v269, 2
    %v271 = vadd.f32 %v269, %v270
    %v272 = vrot.slane %v271, 1
    %v273 = vadd.f32 %v271, %v272
    %v274 = vsel %vm250, %v157, 0.0
    %v275 = vrot.slane %v274, 4
    %v276 = vadd.f32 %v274, %v275
    %v277 = vrot.slane %v276, 2
    %v278 = vadd.f32 %v276, %v277
    %v279 = vrot.slane %v278, 1
    %v280 = vadd.f32 %v278, %v279
    %v281 = vmul.f32 %v273, 0.125
    %v282 = vmul.f32 %v280, 0.125
    %v283 = vsel %vm250, %v202, 0.0
    %v284 = vrot.slane %v283, 4
    %v285 = vadd.f32 %v283, %v284
    %v286 = vrot.slane %v285, 2
    %v287 = vadd.f32 %v285, %v286
    %v288 = vrot.slane %v287, 1
    %v289 = vadd.f32 %v287, %v288
    %v290 = vsel %vm250, %v203, 0.0
    %v291 = vrot.slane %v290, 4
    %v292 = vadd.f32 %v290, %v291
    %v293 = vrot.slane %v292, 2
    %v294 = vadd.f32 %v292, %v293
    %v295 = vrot.slane %v294, 1
    %v296 = vadd.f32 %v294, %v295
    %v297 = vmul.f32 %v289, 0.125
    %v298 = vmul.f32 %v296, 0.125
    %v299 = vsel %vm250, %v248, 0.0
    %v300 = vrot.slane %v299, 4
    %v301 = vadd.f32 %v299, %v300
    %v302 = vrot.slane %v301, 2
    %v303 = vadd.f32 %v301, %v302
    %v304 = vrot.slane %v303, 1
    %v305 = vadd.f32 %v303, %v304
    %v306 = vsel %vm250, %v249, 0.0
    %v307 = vrot.slane %v306, 4
    %v308 = vadd.f32 %v306, %v307
    %v309 = vrot.slane %v308, 2
    %v310 = vadd.f32 %v308, %v309
    %v311 = vrot.slane %v310, 1
    %v312 = vadd.f32 %v310, %v311
    %v313 = vmul.f32 %v305, 0.125
    %v314 = vmul.f32 %v312, 0.125
    %v315 = vld [vmem:[%s2] sm:$0xff]
    %v316 = vld [vmem:[%s2 + $0x8] sm:$0xff]
    %v317 = vld [vmem:[%s2 + $0x10] sm:$0xff]
    %v318 = vld [vmem:[%s2 + $0x18] sm:$0xff]
    %v319 = vld [vmem:[%s2 + $0x20] sm:$0xff]
    %v320 = vld [vmem:[%s2 + $0x28] sm:$0xff]
    %v321 = vld [vmem:[%s2 + $0x30] sm:$0xff]
    %v322 = vld [vmem:[%s2 + $0x38] sm:$0xff]
    %v323 = vld [vmem:[%s2 + $0x40] sm:$0xff]
    %v324 = vld [vmem:[%s2 + $0x48] sm:$0xff]
    %v325 = vld [vmem:[%s2 + $0x50] sm:$0xff]
    %v326 = vld [vmem:[%s2 + $0x58] sm:$0xff]
    %v327 = vld [vmem:[%s2 + $0x60] sm:$0xff]
    %v328 = vld [vmem:[%s2 + $0x68] sm:$0xff]
    %v329 = vld [vmem:[%s2 + $0x70] sm:$0xff]
    %v330 = vld [vmem:[%s2 + $0x78] sm:$0xff]
    %v331 = vld [vmem:[%s3] sm:$0xff]
    %v332 = vld [vmem:[%s3 + $0x8] sm:$0xff]
    %v333 = vld [vmem:[%s3 + $0x10] sm:$0xff]
    %v334 = vld [vmem:[%s3 + $0x18] sm:$0xff]
    %v335 = vld [vmem:[%s3 + $0x20] sm:$0xff]
    %v336 = vld [vmem:[%s3 + $0x28] sm:$0xff]
    %v337 = vld [vmem:[%s3 + $0x30] sm:$0xff]
    %v338 = vld [vmem:[%s3 + $0x38] sm:$0xff]
    %v339 = vld [vmem:[%s3 + $0x40] sm:$0xff]
    %v340 = vld [vmem:[%s3 + $0x48] sm:$0xff]
    %v341 = vld [vmem:[%s3 + $0x50] sm:$0xff]
    %v342 = vld [vmem:[%s3 + $0x58] sm:$0xff]
    %v343 = vld [vmem:[%s3 + $0x60] sm:$0xff]
    %v344 = vld [vmem:[%s3 + $0x68] sm:$0xff]
    %v345 = vld [vmem:[%s3 + $0x70] sm:$0xff]
    %v346 = vld [vmem:[%s3 + $0x78] sm:$0xff]
    %v347 = vld [vmem:[%s4] sm:$0xff]
    %v348 = vld [vmem:[%s5] sm:$0x1]
    %v349 = vld [vmem:[%s6] sm:$0x1]
    %vm352 = vcmask 1041409
    %v353 = vsel %vm352, %v266, %v265
    %v357 = vsel %vm352, %v282, %v281
    %358 = vrot.lane.b32.xlu0 %v357, 32
    %v359 = vpop.permute.xlu0 %358
    %v363 = vsel %vm352, %v298, %v297
    %364 = vrot.lane.b32.xlu0 %v363, 64
    %v365 = vpop.permute.xlu0 %364
    %v369 = vsel %vm352, %v314, %v313
    %370 = vrot.lane.b32.xlu0 %v369, 96
    %v371 = vpop.permute.xlu0 %370
    %v373 = vsel %vm250, %v353, %v359
    %vm374 = vcmask 523264
    %v375 = vsel %vm374, %v373, %v365
    %vm376 = vcmask 785408
    %v377 = vsel %vm376, %v375, %v371
    %378 = vmatpush.msra.mxu0 %v330
    %379 = vmatpush.msra.mxu0 %v329
    %380 = vmatpush.msra.mxu0 %v328
    %381 = vmatpush.msra.mxu0 %v327
    %382 = vmatpush.msra.mxu0 %v326
    %383 = vmatpush.msra.mxu0 %v325
    %384 = vmatpush.msra.mxu0 %v324
    %385 = vmatpush.msra.mxu0 %v323
    %386 = vmatpush.msra.mxu0 %v322
    %387 = vmatpush.msra.mxu0 %v321
    %388 = vmatpush.msra.mxu0 %v320
    %389 = vmatpush.msra.mxu0 %v319
    %390 = vmatpush.msra.mxu0 %v318
    %391 = vmatpush.msra.mxu0 %v317
    %392 = vmatpush.msra.mxu0 %v316
    %393 = vmatpush.msra.mxu0 %v315
    %394 = vmatmul.f32.gmra.mxu0 %v377
    %v395 = vpop.f32.mrf.mxu0
    %v396 = vadd.f32 0.0, %v395
    %397 = vdwg.mxu0
    %398 = vmatpush.msra.mxu0 %v346
    %399 = vmatpush.msra.mxu0 %v345
    %400 = vmatpush.msra.mxu0 %v344
    %401 = vmatpush.msra.mxu0 %v343
    %402 = vmatpush.msra.mxu0 %v342
    %403 = vmatpush.msra.mxu0 %v341
    %404 = vmatpush.msra.mxu0 %v340
    %405 = vmatpush.msra.mxu0 %v339
    %406 = vmatpush.msra.mxu0 %v338
    %407 = vmatpush.msra.mxu0 %v337
    %408 = vmatpush.msra.mxu0 %v336
    %409 = vmatpush.msra.mxu0 %v335
    %410 = vmatpush.msra.mxu0 %v334
    %411 = vmatpush.msra.mxu0 %v333
    %412 = vmatpush.msra.mxu0 %v332
    %413 = vmatpush.msra.mxu0 %v331
    %414 = vmatmul.f32.gmra.mxu0 %v396
    %v415 = vpop.f32.mrf.mxu0
    %v416 = vadd.f32 0.0, %v415
    %417 = vdwg.mxu0
    %v418 = vmul.f32 %v416, 0.0625
    %vm419 = vcmask 64512
    %v421 = vsel %vm419, %v418, 0
    %423 = vmatpush.msra.mxu0 0.0
    %424 = vmatpush.msra.mxu0 0.0
    %425 = vmatpush.msra.mxu0 0.0
    %426 = vmatpush.msra.mxu0 0.0
    %427 = vmatpush.msra.mxu0 0.0
    %428 = vmatpush.msra.mxu0 0.0
    %429 = vmatpush.msra.mxu0 0.0
    %430 = vmatpush.msra.mxu0 0.0
    %431 = vmatpush.msra.mxu0 0.0
    %432 = vmatpush.msra.mxu0 0.0
    %433 = vmatpush.msra.mxu0 0.0
    %434 = vmatpush.msra.mxu0 0.0
    %435 = vmatpush.msra.mxu0 0.0
    %436 = vmatpush.msra.mxu0 0.0
    %437 = vmatpush.msra.mxu0 0.0
    %438 = vmatpush.msra.mxu0 %v347
    %439 = vmatmul.f32.gmra.mxu0 %v421
    %v440 = vpop.f32.mrf.mxu0
    %v441 = vadd.f32 0.0, %v440
    %442 = vdwg.mxu0
    %v443 = vsub.f32 %v396, %v441
    %v444 = vmul.f32 %v443, %v443
    %445 = vmatpush.msra.mxu0 %v346
    %446 = vmatpush.msra.mxu0 %v345
    %447 = vmatpush.msra.mxu0 %v344
    %448 = vmatpush.msra.mxu0 %v343
    %449 = vmatpush.msra.mxu0 %v342
    %450 = vmatpush.msra.mxu0 %v341
    %451 = vmatpush.msra.mxu0 %v340
    %452 = vmatpush.msra.mxu0 %v339
    %453 = vmatpush.msra.mxu0 %v338
    %454 = vmatpush.msra.mxu0 %v337
    %455 = vmatpush.msra.mxu0 %v336
    %456 = vmatpush.msra.mxu0 %v335
    %457 = vmatpush.msra.mxu0 %v334
    %458 = vmatpush.msra.mxu0 %v333
    %459 = vmatpush.msra.mxu0 %v332
    %460 = vmatpush.msra.mxu0 %v331
    %461 = vmatmul.f32.gmra.mxu0 %v444
    %v462 = vpop.f32.mrf.mxu0
    %v463 = vadd.f32 0.0, %v462
    %464 = vdwg.mxu0
    %v465 = vmul.f32 %v463, 0.0625
    %v467 = vsel %vm419, %v465, 0
    %469 = vmatpush.msra.mxu0 0.0
    %470 = vmatpush.msra.mxu0 0.0
    %471 = vmatpush.msra.mxu0 0.0
    %472 = vmatpush.msra.mxu0 0.0
    %473 = vmatpush.msra.mxu0 0.0
    %474 = vmatpush.msra.mxu0 0.0
    %475 = vmatpush.msra.mxu0 0.0
    %476 = vmatpush.msra.mxu0 0.0
    %477 = vmatpush.msra.mxu0 0.0
    %478 = vmatpush.msra.mxu0 0.0
    %479 = vmatpush.msra.mxu0 0.0
    %480 = vmatpush.msra.mxu0 0.0
    %481 = vmatpush.msra.mxu0 0.0
    %482 = vmatpush.msra.mxu0 0.0
    %483 = vmatpush.msra.mxu0 0.0
    %484 = vmatpush.msra.mxu0 %v347
    %485 = vmatmul.f32.gmra.mxu0 %v467
    %v486 = vpop.f32.mrf.mxu0
    %v487 = vadd.f32 1e-05, %v486
    %488 = vdwg.mxu0
    %v489 = vrsqrt.pop %v487
    %v490 = vmul.f32 %v489, %v487
    %v491 = vmul.f32 %v490, %v489
    %v492 = vmul.f32 0.5, %v491
    %v493 = vsub.f32 1.5, %v492
    %v494 = vmul.f32 %v489, %v493
    %vm495 = vweird.f32 %v487
    %vm496 = vweird.f32 %v489
    %vm497 = vmor %vm495, %vm496
    %v498 = vsel %vm497, %v489, %v494
    %v499 = vmul.f32 %v443, %v498
    %v501 = vperm.slane %v348, 0
    %v503 = vmul.f32 %v499, %v501
    %v505 = vperm.slane %v349, 0
    %v507 = vadd.f32 %v503, %v505
    %508 = vst [vmem:[%s7] sm:$0x3] %v507
    // Predicated region
    $region38: #{_forward_uniform.1} parent=1 // pred_check
      _
    $region39: #{_forward_uniform.1} parent=1 // pred_check_branch
      %510 = sbr.rel (0) target = $region41
    $region40: #{_forward_uniform.1} parent=1 // pred_region
      _
    $region41: #{_forward_uniform.1} parent=1 // pred_fallthru
      _
    // Predicated region
    $region42: #{_forward_uniform.1} parent=1 // pred_check
      _
    $region43: #{_forward_uniform.1} parent=1 // pred_check_branch
      %512 = sbr.rel (0) target = $region45
    $region44: #{_forward_uniform.1} parent=1 // pred_region
      _
    $region45: #{_forward_uniform.1} parent=1 // pred_fallthru
      _
    %513 = vsyncpa [#allocation3], 1
    %514 = vsyncpa [#allocation5], 1

</llo_original>
